<compile_context>
chip_gen: v5e
topology: v5e:2x2
jax: 0.10.0
libtpu: 0.0.40
codegen_flags: <defaults>
</compile_context>

<pallas_src>
import functools

import jax
import jax.numpy as jnp
from jax.experimental import pallas as pl
from jax.experimental.pallas import tpu as pltpu

_INV_SQRT2 = 0.7071067811865476
_LANE = 128
_SUBLANE = 8


def _round_up(x, m):
    return ((x + m - 1) // m) * m


# ---------------------------------------------------------------------------
# Kernel
# ---------------------------------------------------------------------------
def _ffn_kernel(x_ref, w1_ref, b1_ref, w2_ref, b2_ref, o_ref, acc_ref):
    """One (block_m, d_model_p) output tile, reduced over the d_ff grid axis.

    x_ref : (block_m, d_model_p)   resident across the k axis (index constant in k)
    w1_ref: (d_model_p, block_k)   d_ff slab of W1^T (resident if block_k == d_ff_p)
    b1_ref: (1, block_k)           d_ff slab of b1
    w2_ref: (block_k, d_model_p)   d_ff slab of W2^T
    b2_ref: (1, d_model_p)
    o_ref : (block_m, d_model_p)
    acc_ref: (block_m, d_model_p)  f32 accumulator scratch
    """
    k = pl.program_id(1)

    @pl.when(k == 0)
    def _init():
        acc_ref[...] = jnp.zeros_like(acc_ref)

    # fc1 partial: full contraction over d_model for one d_ff slab (f32 accumulate).
    h = jnp.dot(x_ref[...], w1_ref[...], preferred_element_type=jnp.float32)
    h = h + b1_ref[...].astype(jnp.float32)

    # exact erf GELU in f32; constant VPU multiply by 1/sqrt(2) (no divide).
    h = 0.5 * h * (1.0 + jax.lax.erf(h * _INV_SQRT2))

    # dropout(p=0.0) == identity (skipped)

    # fc2 partial contribution of this d_ff slab, accumulated in f32.
    acc_ref[...] += jnp.dot(h.astype(w2_ref.dtype), w2_ref[...],
                            preferred_element_type=jnp.float32)

    @pl.when(k == pl.num_programs(1) - 1)
    def _finalize():
        out = acc_ref[...] + b2_ref[...].astype(jnp.float32)
        o_ref[...] = out.astype(o_ref.dtype)


# ---------------------------------------------------------------------------
# Wrapper helpers
# ---------------------------------------------------------------------------
def prepare_ffn_params(w1, b1, w2, b2, weight_dtype=None):
    """One-time prep OUTSIDE the hot path: transpose PyTorch-layout weights to
    (in, out), zero-pad feature dims to multiples of 128 lanes, and optionally
    cast weights (e.g. jnp.bfloat16 for v6e/v7x MXUs). Biases stay f32."""
    d_ff, d_model = w1.shape
    d_model_p = _round_up(d_model, _LANE)
    d_ff_p = _round_up(d_ff, _LANE)

    w1_t = jnp.zeros((d_model_p, d_ff_p), w1.dtype).at[:d_model, :d_ff].set(w1.T)
    w2_t = jnp.zeros((d_ff_p, d_model_p), w2.dtype).at[:d_ff, :d_model].set(w2.T)
    b1_p = jnp.zeros((1, d_ff_p), jnp.float32).at[0, :d_ff].set(b1.astype(jnp.float32))
    b2_p = jnp.zeros((1, d_model_p), jnp.float32).at[0, :d_model].set(b2.astype(jnp.float32))

    if weight_dtype is not None:
        w1_t = w1_t.astype(weight_dtype)
        w2_t = w2_t.astype(weight_dtype)
    return w1_t, b1_p, w2_t, b2_p


def _default_vmem_limit_bytes():
    # ~100 MiB on v5e/v6e (128 MiB physical), ~56 MiB on v7x (64 MiB physical).
    try:
        cap = int(pltpu.get_tpu_info().vmem_capacity_bytes)
    except Exception:
        cap = 64 * 1024 * 1024
    return min((cap * 7) // 8, 100 * 1024 * 1024)


def _select_tiles(M, d_model_p, d_ff_p, x_bytes, w_bytes, out_bytes, vmem_limit_bytes):
    """Pick (block_m, block_k) that fit a conservative VMEM estimate.

    For each candidate block_m (largest first), prefer block_k == d_ff_p so the
    weight block index is constant and the weights are fetched from HBM exactly
    once; otherwise fall back to the widest d_ff slab that fits."""
    budget = int(vmem_limit_bytes * 0.75)

    def fits(bm, bk):
        est = 2 * bm * d_model_p * x_bytes          # x tile, double-buffered
        est += 2 * bm * d_model_p * out_bytes       # output tile, double-buffered
        est += bm * d_model_p * 4                   # f32 accumulator scratch
        est += bm * bk * 4                          # fc1/GELU intermediate
        est += 2 * 2 * d_model_p * bk * w_bytes     # W1^T + W2^T slabs, double-buffered
        est += 4 * (bk + d_model_p) * 4             # biases (tiny)
        return est <= budget

    # block_m candidates: keep >= 2 steps on the parallel M axis when possible.
    if M >= 1024:
        bm0 = 512
    elif M > _SUBLANE:
        bm0 = min(512, _round_up(pl.cdiv(M, 2), _SUBLANE))
    else:
        bm0 = _SUBLANE
    bm_candidates = []
    bm = bm0
    while bm > _SUBLANE:
        bm_candidates.append(bm)
        bm = _round_up(bm // 2, _SUBLANE)
    bm_candidates.append(_SUBLANE)

    # block_k candidates: full d_ff (weights resident) first, then 512/256/128 slabs.
    bk_candidates = [d_ff_p] + [bk for bk in (512, 256, 128)
                                if bk < d_ff_p and d_ff_p % bk == 0]

    for bm in bm_candidates:
        for bk in bk_candidates:
            if fits(bm, bk):
                return bm, bk
    return _SUBLANE, min(_LANE, d_ff_p)


# ---------------------------------------------------------------------------
# Public entry point
# ---------------------------------------------------------------------------
@functools.partial(jax.jit, static_argnames=("block_m", "block_k", "vmem_limit_bytes"))
def feed_forward_block(x, w1_t, b1_p, w2_t, b2_p, *, block_m=None, block_k=None,
                       vmem_limit_bytes=None):
    """x: (B, S, d_model). w1_t/b1_p/w2_t/b2_p come from prepare_ffn_params
    (already transposed to (in, out) and lane-padded)."""
    B, S, d_model = x.shape
    d_model_p, d_ff_p = w1_t.shape
    M = B * S

    if vmem_limit_bytes is None:
        vmem_limit_bytes = _default_vmem_limit_bytes()

    x_bytes = jnp.dtype(x.dtype).itemsize
    w_bytes = jnp.dtype(w1_t.dtype).itemsize
    bm_auto, bk_auto = _select_tiles(M, d_model_p, d_ff_p,
                                     x_bytes, w_bytes, x_bytes, vmem_limit_bytes)
    if block_m is None:
        block_m = bm_auto
    if block_k is None:
        block_k = bk_auto

    assert block_m % _SUBLANE == 0, "block_m must be a multiple of 8"
    assert block_k % _LANE == 0 and d_ff_p % block_k == 0, "block_k must tile d_ff"

    M_p = _round_up(M, block_m)

    x2d = x.reshape(M, d_model)
    if (M_p, d_model_p) != (M, d_model):
        x2d = jnp.pad(x2d, ((0, M_p - M), (0, d_model_p - d_model)))

    grid = (M_p // block_m, d_ff_p // block_k)

    flops = 4 * M_p * d_model_p * d_ff_p                 # fc1 + fc2 MACs * 2
    transcendentals = M_p * d_ff_p                       # one erf per hidden element
    weight_reads = 1 if block_k == d_ff_p else grid[0]   # resident vs re-streamed
    bytes_accessed = (
        M_p * d_model_p * x_bytes                        # x
        + weight_reads * 2 * d_model_p * d_ff_p * w_bytes
        + 4 * (d_ff_p + d_model_p)                       # biases (f32)
        + M_p * d_model_p * x_bytes                      # output
    )

    out2d = pl.pallas_call(
        _ffn_kernel,
        out_shape=jax.ShapeDtypeStruct((M_p, d_model_p), x.dtype),
        grid_spec=pltpu.PrefetchScalarGridSpec(
            num_scalar_prefetch=0,
            grid=grid,
            in_specs=[
                pl.BlockSpec((block_m, d_model_p), lambda i, k: (i, 0)),   # x tile
                pl.BlockSpec((d_model_p, block_k), lambda i, k: (0, k)),   # W1^T slab
                pl.BlockSpec((1, block_k), lambda i, k: (0, k)),           # b1 slab
                pl.BlockSpec((block_k, d_model_p), lambda i, k: (k, 0)),   # W2^T slab
                pl.BlockSpec((1, d_model_p), lambda i, k: (0, 0)),         # b2
            ],
            out_specs=pl.BlockSpec((block_m, d_model_p), lambda i, k: (i, 0)),
            scratch_shapes=[pltpu.VMEM((block_m, d_model_p), jnp.float32)],
        ),
        compiler_params=pltpu.CompilerParams(
            dimension_semantics=("parallel", "arbitrary"),
            vmem_limit_bytes=int(vmem_limit_bytes),
        ),
        cost_estimate=pl.CostEstimate(
            flops=int(flops),
            transcendentals=int(transcendentals),
            bytes_accessed=int(bytes_accessed),
        ),
    )(x2d, w1_t, b1_p, w2_t, b2_p)

    return out2d[:M, :d_model].reshape(B, S, d_model)


# ---------------------------------------------------------------------------
# Reference + demo
# ---------------------------------------------------------------------------
def _init_scaled_linear(key, in_features, out_features, initial_scale=1.0,
                        dtype=jnp.float32):
    """Deterministic init mimicking nn.Linear (uniform +/- 1/sqrt(fan_in)); the
    ScaledLinear 'scale' is folded into the weights here."""
    kw, kb = jax.random.split(key)
    bound = 1.0 / (in_features ** 0.5)
    w = jax.random.uniform(kw, (out_features, in_features), dtype,
                           minval=-bound, maxval=bound) * initial_scale
    b = jax.random.uniform(kb, (out_features,), dtype,
                           minval=-bound, maxval=bound) * initial_scale
    return w, b


def _reference(x, w1, b1, w2, b2):
    h = jnp.einsum("bsd,fd->bsf", x, w1) + b1
    h = 0.5 * h * (1.0 + jax.lax.erf(h * _INV_SQRT2))
    return jnp.einsum("bsf,df->bsd", h, w2) + b2


if __name__ == "__main__":
    d_model = 32
    d_ff = d_model * 4
    B, S = 2, 8

    key = jax.random.PRNGKey(0)
    kx, k1, k2 = jax.random.split(key, 3)

    x = jax.random.normal(kx, (B, S, d_model), jnp.float32)
    w1, b1 = _init_scaled_linear(k1, d_model, d_ff)
    w2, b2 = _init_scaled_linear(k2, d_ff, d_model)

    # One-time weight prep (transpose + 128-lane padding) outside the jitted hot path.
    params = prepare_ffn_params(w1, b1, w2, b2)

    out = feed_forward_block(x, *params)
    out = jax.block_until_ready(out)

    ref = _reference(x, w1, b1, w2, b2)
    assert out.shape == (B, S, d_model)
    assert jnp.allclose(out, ref, atol=1e-5, rtol=1e-5), "mismatch vs reference"

    print("KERNEL_OK")
</pallas_src>

<mosaic_0001>
module attributes {stable_mosaic.version = 11 : i64} {
  func.func @_ffn_kernel(%arg0: i32, %arg1: i32, %arg2: memref<8x128xf32, #tpu.memory_space<vmem>>, %arg3: memref<128x128xf32, #tpu.memory_space<vmem>>, %arg4: memref<1x128xf32, #tpu.memory_space<vmem>>, %arg5: memref<128x128xf32, #tpu.memory_space<vmem>>, %arg6: memref<1x128xf32, #tpu.memory_space<vmem>>, %arg7: memref<8x128xf32, #tpu.memory_space<vmem>>, %arg8: memref<8x128xf32, #tpu.memory_space<vmem>>) attributes {dimension_semantics = [#tpu.dimension_semantics<parallel>, #tpu.dimension_semantics<arbitrary>], iteration_bounds = array<i64: 2, 1>, scalar_prefetch = 0 : i64, scratch_operands = 1 : i64, tpu.core_type = #tpu.core_type<tc>, window_params = [{transform_indices = @transform_0, window_bounds = array<i64: 8, 128>}, {transform_indices = @transform_1, window_bounds = array<i64: 128, 128>}, {transform_indices = @transform_2, window_bounds = array<i64: 1, 128>}, {transform_indices = @transform_3, window_bounds = array<i64: 128, 128>}, {pipeline_mode = #tpu.pipeline_mode<synchronous>, transform_indices = @transform_4, window_bounds = array<i64: 1, 128>}, {transform_indices = @transform_5, window_bounds = array<i64: 8, 128>}]} {
    %c0_i32 = arith.constant 0 : i32
    %0 = arith.cmpi eq, %arg1, %c0_i32 : i32
    %1 = arith.extui %0 : i1 to i32
    %c0_i32_0 = arith.constant 0 : i32
    %2 = arith.cmpi ne, %1, %c0_i32_0 : i32
    scf.if %2 {
      %cst_18 = arith.constant 0.000000e+00 : f32
      %25 = vector.broadcast %cst_18 : f32 to vector<8x128xf32>
      %c0_19 = arith.constant 0 : index
      %c0_20 = arith.constant 0 : index
      %26 = vector.load %arg8[%c0_19, %c0_20] : memref<8x128xf32, #tpu.memory_space<vmem>>, vector<8x128xf32>
      tpu.vector_store %arg8[%c0_19, %c0_20], %25 {strides = array<i32>} : memref<8x128xf32, #tpu.memory_space<vmem>>, vector<8x128xf32>,
    } else {
    }
    %c0 = arith.constant 0 : index
    %c0_1 = arith.constant 0 : index
    %3 = vector.load %arg2[%c0, %c0_1] : memref<8x128xf32, #tpu.memory_space<vmem>>, vector<8x128xf32>
    %c0_2 = arith.constant 0 : index
    %c0_3 = arith.constant 0 : index
    %4 = vector.load %arg3[%c0_2, %c0_3] : memref<128x128xf32, #tpu.memory_space<vmem>>, vector<128x128xf32>
    %cst = arith.constant dense<0.000000e+00> : vector<8x128xf32>
    %5 = tpu.matmul %3, %4, %cst {dimension_numbers = #tpu.dot_dimension_numbers<[1], [0], [0], [1], [0, 0, 1, 1], [], []>} : vector<8x128xf32>, vector<128x128xf32>, vector<8x128xf32> -> vector<8x128xf32>
    %c0_4 = arith.constant 0 : index
    %c0_5 = arith.constant 0 : index
    %6 = vector.load %arg4[%c0_4, %c0_5] : memref<1x128xf32, #tpu.memory_space<vmem>>, vector<1x128xf32>
    %7 = vector.broadcast %6 : vector<1x128xf32> to vector<8x128xf32>
    %8 = arith.addf %5, %7 : vector<8x128xf32>
    %cst_6 = arith.constant 5.000000e-01 : f32
    %9 = vector.broadcast %cst_6 : f32 to vector<8x128xf32>
    %10 = arith.mulf %9, %8 : vector<8x128xf32>
    %cst_7 = arith.constant 0.707106769 : f32
    %11 = vector.broadcast %cst_7 : f32 to vector<8x128xf32>
    %12 = arith.mulf %8, %11 : vector<8x128xf32>
    %13 = math.erf %12 : vector<8x128xf32>
    %cst_8 = arith.constant 1.000000e+00 : f32
    %14 = vector.broadcast %cst_8 : f32 to vector<8x128xf32>
    %15 = arith.addf %14, %13 : vector<8x128xf32>
    %16 = arith.mulf %10, %15 : vector<8x128xf32>
    %c0_9 = arith.constant 0 : index
    %c0_10 = arith.constant 0 : index
    %17 = vector.load %arg8[%c0_9, %c0_10] : memref<8x128xf32, #tpu.memory_space<vmem>>, vector<8x128xf32>
    %c0_11 = arith.constant 0 : index
    %c0_12 = arith.constant 0 : index
    %18 = vector.load %arg5[%c0_11, %c0_12] : memref<128x128xf32, #tpu.memory_space<vmem>>, vector<128x128xf32>
    %cst_13 = arith.constant dense<0.000000e+00> : vector<8x128xf32>
    %19 = tpu.matmul %16, %18, %cst_13 {dimension_numbers = #tpu.dot_dimension_numbers<[1], [0], [0], [1], [0, 0, 1, 1], [], []>} : vector<8x128xf32>, vector<128x128xf32>, vector<8x128xf32> -> vector<8x128xf32>
    %20 = arith.addf %17, %19 : vector<8x128xf32>
    %c0_14 = arith.constant 0 : index
    %c0_15 = arith.constant 0 : index
    %21 = vector.load %arg8[%c0_14, %c0_15] : memref<8x128xf32, #tpu.memory_space<vmem>>, vector<8x128xf32>
    tpu.vector_store %arg8[%c0_14, %c0_15], %20 {strides = array<i32>} : memref<8x128xf32, #tpu.memory_space<vmem>>, vector<8x128xf32>,
    %c0_i32_16 = arith.constant 0 : i32
    %22 = arith.cmpi eq, %arg1, %c0_i32_16 : i32
    %23 = arith.extui %22 : i1 to i32
    %c0_i32_17 = arith.constant 0 : i32
    %24 = arith.cmpi ne, %23, %c0_i32_17 : i32
    scf.if %24 {
      %c0_18 = arith.constant 0 : index
      %c0_19 = arith.constant 0 : index
      %25 = vector.load %arg8[%c0_18, %c0_19] : memref<8x128xf32, #tpu.memory_space<vmem>>, vector<8x128xf32>
      %c0_20 = arith.constant 0 : index
      %c0_21 = arith.constant 0 : index
      %26 = vector.load %arg6[%c0_20, %c0_21] : memref<1x128xf32, #tpu.memory_space<vmem>>, vector<1x128xf32>
      %27 = vector.broadcast %26 : vector<1x128xf32> to vector<8x128xf32>
      %28 = arith.addf %25, %27 : vector<8x128xf32>
      %c0_22 = arith.constant 0 : index
      %c0_23 = arith.constant 0 : index
      %29 = vector.load %arg7[%c0_22, %c0_23] : memref<8x128xf32, #tpu.memory_space<vmem>>, vector<8x128xf32>
      tpu.vector_store %arg7[%c0_22, %c0_23], %28 {strides = array<i32>} : memref<8x128xf32, #tpu.memory_space<vmem>>, vector<8x128xf32>,
    } else {
    }
    return
  }
  func.func @transform_0(%arg0: i32, %arg1: i32) -> (i32, i32) {
    %c0_i32 = arith.constant 0 : i32
    %c0_i32_0 = arith.constant 0 : i32
    return %arg0, %c0_i32 : i32, i32
  }
  func.func @transform_1(%arg0: i32, %arg1: i32) -> (i32, i32) {
    %c0_i32 = arith.constant 0 : i32
    %c0_i32_0 = arith.constant 0 : i32
    return %c0_i32, %arg1 : i32, i32
  }
  func.func @transform_2(%arg0: i32, %arg1: i32) -> (i32, i32) {
    %c0_i32 = arith.constant 0 : i32
    %c0_i32_0 = arith.constant 0 : i32
    return %c0_i32, %arg1 : i32, i32
  }
  func.func @transform_3(%arg0: i32, %arg1: i32) -> (i32, i32) {
    %c0_i32 = arith.constant 0 : i32
    %c0_i32_0 = arith.constant 0 : i32
    return %arg1, %c0_i32 : i32, i32
  }
  func.func @transform_4(%arg0: i32, %arg1: i32) -> (i32, i32) {
    %c0_i32 = arith.constant 0 : i32
    %c0_i32_0 = arith.constant 0 : i32
    %c0_i32_1 = arith.constant 0 : i32
    return %c0_i32, %c0_i32_0 : i32, i32
  }
  func.func @transform_5(%arg0: i32, %arg1: i32) -> (i32, i32) {
    %c0_i32 = arith.constant 0 : i32
    %c0_i32_0 = arith.constant 0 : i32
    return %arg0, %c0_i32 : i32, i32
  }
}

</mosaic_0001>

<llo_original>
// kernel: feed_forward_block.1
$region0: #{feed_forward_block.1}
  #allocation0 [shape = 'u32[]', space=smem, size = 0x4, offset = 0x4, fixed_abs, tag = 'smem constant byte address 0x4 - core index']
  #allocation1 [shape = 'u32[72,128]{1,0:T(1,128)}', space=vmem, size = 0x9000, scoped, tag = 'internal scratch']
  #allocation2 [shape = 'f32[8,128]{1,0:T(8,128)}', space=vmem, size = 0x1000, scoped, tag = 'scratch operand']
  %s0 = inlined_call_operand.vmem [shape: f32[16,128], index: 0, kind: input, shape index: {}]
  %s1 = inlined_call_operand.hbm [shape: f32[128,128], index: 1, kind: input, shape index: {}]
  %s2 = inlined_call_operand.vmem [shape: f32[1,128], index: 2, kind: input, shape index: {}]
  %s3 = inlined_call_operand.hbm [shape: f32[128,128], index: 3, kind: input, shape index: {}]
  %s4 = inlined_call_operand.vmem [shape: f32[1,128], index: 4, kind: input, shape index: {}]
  %s5 = inlined_call_operand.vmem [shape: f32[16,128], index: 5, kind: output, shape index: {}]
  %s6 = sld [smem:[#allocation0]]
  $region69: #{feed_forward_block.1} parent=0
    _
  %s8 = ssub.s32 1, %s6
  %s9 = scalar_select 0, %s8, %s6
  $region1: #{feed_forward_block.1} parent=0
    #allocation3 [shape = 'u8[65536]{0}', space=vmem, size = 0x10000, scoped, tag = 'input window, operand 1, single buffered']
    #allocation4 [shape = 's32[2]{0}', space=sflag, size = 0x8, scoped, tag = 'scoped memory for feed_forward_block.1']
    #allocation5 [shape = 'u8[65536]{0}', space=vmem, size = 0x10000, scoped, tag = 'input window, operand 3, single buffered']
    #allocation6 [shape = 's32[1]{0}', space=sflag, size = 0x4, scoped, tag = 'scoped memory for feed_forward_block.1']
    %10 = vsyncpa [#allocation4], 0
    %11 = vsyncpa [#allocation6], 0
    loop: start=0, step=1, limit=4
    $region2: #{feed_forward_block.1} parent=1 // loop_pre_header
      _
    $region3: #{feed_forward_block.1} parent=1 // loop_header
      %s13 = sphi 0, %s17
      %p14 = scmp.ge.s32.totalorder %s13, 4
      %s20 = sphi 0, %s32
      %s21 = sphi 0, %s28
      %s22 = sphi 0, %s20
      %s23 = sphi 0, %s21
      %s24 = sphi 0, %s22
      %s25 = sphi 0, %s23
      %s35 = sphi 0, %s37
      %s38 = sphi 0, %s35
      %s39 = sphi 0, %s38
      %s55 = sphi 0, %s39
      %s61 = sphi 0, %s63
      %s64 = sphi 0, %s61
      %s65 = sphi 0, %s64
      %s81 = sphi 0, %s65
      %s87 = sphi 0, %s89
      %s90 = sphi 0, %s87
      %s91 = sphi 0, %s90
      %s107 = sphi 0, %s91
      %s113 = sphi 0, %s115
      %s116 = sphi 0, %s113
      %s117 = sphi 0, %s116
      %s133 = sphi 0, %s117
      %s137 = sphi 0, %s137
      %s139 = sphi 0, %s137
      %s140 = sphi 0, %s139
      %s154 = sphi 0, %s140
      %s160 = sphi 0, %s162
      %s163 = sphi 0, %s160
      %s164 = sphi 0, %s163
      %s180 = sphi 0, %s164
    $region4: #{feed_forward_block.1} parent=1 // loop_header_branch
      %16 = sbr.rel (%p14) target = $region8
    $region5: #{feed_forward_block.1} parent=1 // loop_body
      %s18 = ssub.s32 %s13, 1
      %s19 = ssub.s32 %s13, 2
      %s26 = sadd.s32 1, %s21
      %p27 = scmp.ge.s32.totalorder %s26, 1
      %s28 = scalar_select %p27, 0, %s26
      %s29 = sadd.s32 1, %s20
      %s30 = scalar_select %p27, %s29, %s20
      %p31 = scmp.ge.s32.totalorder %s30, 2
      %s32 = scalar_select %p31, 0, %s30
      %s33 = ssub.s32 %s20, %s32
      %p34 = scmp.eq.s32.totalorder %s33, 0
      %s36 = sadd.s32 %s35, 1
      %s37 = scalar_select %p34, %s35, %s36
      %p40 = pneg %p34
      %p41 = scmp.eq.s32.totalorder %s13, 1
      %p42 = por %p40, %p41
      %p43 = scmp.ne.s32.totalorder %s35, %s38
      %p44 = scmp.eq.s32.totalorder %s13, 0
      %p45 = por %p43, %p44
      %p46 = scmp.ne.s32.totalorder %s35, %s38
      %p47 = scmp.eq.s32.totalorder %s18, 1
      %p48 = por %p46, %p47
      %p49 = scmp.ne.s32.totalorder %s38, %s39
      %p50 = scmp.eq.s32.totalorder %s18, 0
      %p51 = por %p49, %p50
      %p52 = scmp.ne.s32.totalorder %s38, %s39
      %p53 = scmp.eq.s32.totalorder %s19, 1
      %p54 = por %p52, %p53
      %p56 = scmp.ne.s32.totalorder %s39, %s55
      %p57 = scmp.eq.s32.totalorder %s19, 0
      %p58 = por %p56, %p57
      %s59 = ssub.s32 %s21, %s28
      %p60 = scmp.eq.s32.totalorder %s59, 0
      %s62 = sadd.s32 %s61, 1
      %s63 = scalar_select %p60, %s61, %s62
      %p66 = pneg %p60
      %p67 = scmp.eq.s32.totalorder %s13, 1
      %p68 = por %p66, %p67
      %p69 = scmp.ne.s32.totalorder %s61, %s64
      %p70 = scmp.eq.s32.totalorder %s13, 0
      %p71 = por %p69, %p70
      %p72 = scmp.ne.s32.totalorder %s61, %s64
      %p73 = scmp.eq.s32.totalorder %s18, 1
      %p74 = por %p72, %p73
      %p75 = scmp.ne.s32.totalorder %s64, %s65
      %p76 = scmp.eq.s32.totalorder %s18, 0
      %p77 = por %p75, %p76
      %p78 = scmp.ne.s32.totalorder %s64, %s65
      %p79 = scmp.eq.s32.totalorder %s19, 1
      %p80 = por %p78, %p79
      %p82 = scmp.ne.s32.totalorder %s65, %s81
      %p83 = scmp.eq.s32.totalorder %s19, 0
      %p84 = por %p82, %p83
      %s85 = ssub.s32 %s21, %s28
      %p86 = scmp.eq.s32.totalorder %s85, 0
      %s88 = sadd.s32 %s87, 1
      %s89 = scalar_select %p86, %s87, %s88
      %p92 = pneg %p86
      %p93 = scmp.eq.s32.totalorder %s13, 1
      %p94 = por %p92, %p93
      %p95 = scmp.ne.s32.totalorder %s87, %s90
      %p96 = scmp.eq.s32.totalorder %s13, 0
      %p97 = por %p95, %p96
      %p98 = scmp.ne.s32.totalorder %s87, %s90
      %p99 = scmp.eq.s32.totalorder %s18, 1
      %p100 = por %p98, %p99
      %p101 = scmp.ne.s32.totalorder %s90, %s91
      %p102 = scmp.eq.s32.totalorder %s18, 0
      %p103 = por %p101, %p102
      %p104 = scmp.ne.s32.totalorder %s90, %s91
      %p105 = scmp.eq.s32.totalorder %s19, 1
      %p106 = por %p104, %p105
      %p108 = scmp.ne.s32.totalorder %s91, %s107
      %p109 = scmp.eq.s32.totalorder %s19, 0
      %p110 = por %p108, %p109
      %s111 = ssub.s32 %s21, %s28
      %p112 = scmp.eq.s32.totalorder %s111, 0
      %s114 = sadd.s32 %s113, 1
      %s115 = scalar_select %p112, %s113, %s114
      %p118 = pneg %p112
      %p119 = scmp.eq.s32.totalorder %s13, 1
      %p120 = por %p118, %p119
      %p121 = scmp.ne.s32.totalorder %s113, %s116
      %p122 = scmp.eq.s32.totalorder %s13, 0
      %p123 = por %p121, %p122
      %p124 = scmp.ne.s32.totalorder %s113, %s116
      %p125 = scmp.eq.s32.totalorder %s18, 1
      %p126 = por %p124, %p125
      %p127 = scmp.ne.s32.totalorder %s116, %s117
      %p128 = scmp.eq.s32.totalorder %s18, 0
      %p129 = por %p127, %p128
      %p130 = scmp.ne.s32.totalorder %s116, %s117
      %p131 = scmp.eq.s32.totalorder %s19, 1
      %p132 = por %p130, %p131
      %p134 = scmp.ne.s32.totalorder %s117, %s133
      %p135 = scmp.eq.s32.totalorder %s19, 0
      %p136 = por %p134, %p135
      %s138 = sadd.s32 %s137, 1
      %p141 = scmp.eq.s32.totalorder %s13, 1
      %p142 = scmp.ne.s32.totalorder %s137, %s139
      %p143 = scmp.eq.s32.totalorder %s13, 0
      %p144 = por %p142, %p143
      %p145 = scmp.ne.s32.totalorder %s137, %s139
      %p146 = scmp.eq.s32.totalorder %s18, 1
      %p147 = por %p145, %p146
      %p148 = scmp.ne.s32.totalorder %s139, %s140
      %p149 = scmp.eq.s32.totalorder %s18, 0
      %p150 = por %p148, %p149
      %p151 = scmp.ne.s32.totalorder %s139, %s140
      %p152 = scmp.eq.s32.totalorder %s19, 1
      %p153 = por %p151, %p152
      %p155 = scmp.ne.s32.totalorder %s140, %s154
      %p156 = scmp.eq.s32.totalorder %s19, 0
      %p157 = por %p155, %p156
      %s158 = ssub.s32 %s20, %s32
      %p159 = scmp.eq.s32.totalorder %s158, 0
      %s161 = sadd.s32 %s160, 1
      %s162 = scalar_select %p159, %s160, %s161
      %p165 = pneg %p159
      %p166 = scmp.eq.s32.totalorder %s13, 1
      %p167 = por %p165, %p166
      %p168 = scmp.ne.s32.totalorder %s160, %s163
      %p169 = scmp.eq.s32.totalorder %s13, 0
      %p170 = por %p168, %p169
      %p171 = scmp.ne.s32.totalorder %s160, %s163
      %p172 = scmp.eq.s32.totalorder %s18, 1
      %p173 = por %p171, %p172
      %p174 = scmp.ne.s32.totalorder %s163, %s164
      %p175 = scmp.eq.s32.totalorder %s18, 0
      %p176 = por %p174, %p175
      %p177 = scmp.ne.s32.totalorder %s163, %s164
      %p178 = scmp.eq.s32.totalorder %s19, 1
      %p179 = por %p177, %p178
      %p181 = scmp.ne.s32.totalorder %s164, %s180
      %p182 = scmp.eq.s32.totalorder %s19, 0
      %p183 = por %p181, %p182
      %p184 = scmp.le.s32.totalorder 1, %s13
      %p185 = scmp.lt.s32.totalorder %s13, 3
      %p186 = pnand %p184, %p185
      %p187 = pneg %p186
      // Predicated region
      $region9: #{feed_forward_block.1} parent=5 // pred_check
        _
      $region10: #{feed_forward_block.1} parent=5 // pred_check_branch
        %189 = sbr.rel (%p186) target = $region12
      $region11: #{feed_forward_block.1} parent=5 // pred_region
        %s190 = ssub.s32 %s13, 1
        // Predicated region
        $region13: #{feed_forward_block.1} parent=11 // pred_check
          %p191 = pneg %p77
        $region14: #{feed_forward_block.1} parent=11 // pred_check_branch
          %193 = sbr.rel (%p191) target = $region16
        $region15: #{feed_forward_block.1} parent=11 // pred_region
          %195 = vsyncadd [#allocation4], 0
          %s196 = smul.addr %s23, 8
          %s197 = scalar_lea.hbm %s1, %s196
          %s198 = sshll.u32 %s197, 4
          %s199 = int_to_ptr.hbm [resolvable:$true] %s198
          %s200 = sshll.u32 [#allocation3], 4
          %s201 = int_to_ptr.vmem [resolvable:$true] %s200
          %206 = dma.hbm_to_vmem [thread:$0]  %s199, 2048, %s201, [#allocation4], 128, 128, 8
        $region16: #{feed_forward_block.1} parent=11 // pred_fallthru
          _
        // Predicated region
        $region17: #{feed_forward_block.1} parent=11 // pred_check
          %p207 = pneg %p103
        $region18: #{feed_forward_block.1} parent=11 // pred_check_branch
          %209 = sbr.rel (%p207) target = $region20
        $region19: #{feed_forward_block.1} parent=11 // pred_region
          %p210 = scmp.lt.s32.totalorder %s23, 0
          %s211 = scalar_select %p210, %s23, 0
          %s212 = scalar_lea.vmem %s2, %s211
        $region20: #{feed_forward_block.1} parent=11 // pred_fallthru
          _
        // Predicated region
        $region21: #{feed_forward_block.1} parent=11 // pred_check
          %p213 = pneg %p129
        $region22: #{feed_forward_block.1} parent=11 // pred_check_branch
          %215 = sbr.rel (%p213) target = $region24
        $region23: #{feed_forward_block.1} parent=11 // pred_region
          %s216 = smul.u32 16, %s23
          %218 = vsyncadd [#allocation6], 0
          %s219 = smul.addr %s216, 8
          %s220 = scalar_lea.hbm %s3, %s219
          %s221 = sshll.u32 %s220, 4
          %s222 = int_to_ptr.hbm [resolvable:$true] %s221
          %s223 = sshll.u32 [#allocation5], 4
          %s224 = int_to_ptr.vmem [resolvable:$true] %s223
          %229 = dma.hbm_to_vmem [thread:$0]  %s222, 2048, %s224, [#allocation6], 128, 128, 8
        $region24: #{feed_forward_block.1} parent=11 // pred_fallthru
          _
        // Predicated region
        $region25: #{feed_forward_block.1} parent=11 // pred_check
          %p230 = pneg %p150
        $region26: #{feed_forward_block.1} parent=11 // pred_check_branch
          %232 = sbr.rel (%p230) target = $region28
        $region27: #{feed_forward_block.1} parent=11 // pred_region
          _
        $region28: #{feed_forward_block.1} parent=11 // pred_fallthru
          _
      $region12: #{feed_forward_block.1} parent=5 // pred_fallthru
        _
      %p233 = scmp.lt.s32.totalorder %s13, 2
      // Predicated region
      $region29: #{feed_forward_block.1} parent=5 // pred_check
        %p234 = pneg %p233
      $region30: #{feed_forward_block.1} parent=5 // pred_check_branch
        %236 = sbr.rel (%p234) target = $region32
      $region31: #{feed_forward_block.1} parent=5 // pred_region
        // Predicated region
        $region33: #{feed_forward_block.1} parent=31 // pred_check
          %p237 = pneg %p45
        $region34: #{feed_forward_block.1} parent=31 // pred_check_branch
          %239 = sbr.rel (%p237) target = $region36
        $region35: #{feed_forward_block.1} parent=31 // pred_region
          %p240 = scmp.lt.s32.totalorder %s20, 1
          %s241 = scalar_select %p240, %s20, 1
          %s242 = smul.addr %s241, 8
          %s243 = scalar_lea.vmem %s0, %s242
        $region36: #{feed_forward_block.1} parent=31 // pred_fallthru
          _
      $region32: #{feed_forward_block.1} parent=5 // pred_fallthru
        _
      %p244 = scmp.le.s32.totalorder 1, %s13
      %p245 = scmp.lt.s32.totalorder %s13, 3
      %p246 = pnand %p244, %p245
      %p247 = pneg %p246
      // Predicated region
      $region37: #{feed_forward_block.1} parent=5 // pred_check
        _
      $region38: #{feed_forward_block.1} parent=5 // pred_check_branch
        %249 = sbr.rel (%p246) target = $region40
      $region39: #{feed_forward_block.1} parent=5 // pred_region
        %s250 = ssub.s32 %s13, 1
        // Predicated region
        $region41: #{feed_forward_block.1} parent=39 // pred_check
          %p251 = pneg %p77
        $region42: #{feed_forward_block.1} parent=39 // pred_check_branch
          %253 = sbr.rel (%p251) target = $region44
        $region43: #{feed_forward_block.1} parent=39 // pred_region
          %255 = dma.done [#allocation4], 2048
        $region44: #{feed_forward_block.1} parent=39 // pred_fallthru
          _
        // Predicated region
        $region45: #{feed_forward_block.1} parent=39 // pred_check
          %p256 = pneg %p129
        $region46: #{feed_forward_block.1} parent=39 // pred_check_branch
          %258 = sbr.rel (%p256) target = $region48
        $region47: #{feed_forward_block.1} parent=39 // pred_region
          %260 = dma.done [#allocation6], 2048
        $region48: #{feed_forward_block.1} parent=39 // pred_fallthru
          _
        %p261 = scmp.lt.s32.totalorder %s22, 1
        %s262 = scalar_select %p261, %s22, 1
        %s263 = smul.addr %s262, 8
        %s264 = scalar_lea.vmem %s0, %s263
        %p265 = pneg %p51
        %p266 = pneg %p48
        %p267 = pneg %p77
        %p268 = pneg %p74
        %p269 = scmp.lt.s32.totalorder %s23, 0
        %s270 = scalar_select %p269, %s23, 0
        %s271 = scalar_lea.vmem %s2, %s270
        %p272 = pneg %p103
        %p273 = pneg %p100
        %p274 = pneg %p129
        %p275 = pneg %p126
        %p276 = pneg %p150
        %p277 = pneg %p147
        %p278 = pneg %p176
        %p279 = pneg %p173
        %p280 = scmp.lt.s32.totalorder %s22, 1
        %s281 = scalar_select %p280, %s22, 1
        %s282 = smul.addr %s281, 8
        %s283 = scalar_lea.vmem %s5, %s282
        %p284 = scmp.lt.s32.totalorder %s22, 1
        %s285 = scalar_select %p284, %s22, 1
        %s286 = smul.addr %s285, 8
        %s287 = scalar_lea.vmem %s0, %s286
        %p288 = scmp.lt.s32.totalorder %s23, 0
        %s289 = scalar_select %p288, %s23, 0
        %s290 = scalar_lea.vmem %s2, %s289
        %s291 = smul.u32 16, %s23
        %p292 = scmp.lt.s32.totalorder %s22, 1
        %s293 = scalar_select %p292, %s22, 1
        %s294 = smul.addr %s293, 8
        %s295 = scalar_lea.vmem %s5, %s294
        %p296 = scmp.eq.s32.totalorder %s23, 0
        // Predicated region
        $region49: #{feed_forward_block.1} parent=39 // pred_check
          %p297 = pneg %p296
        $region50: #{feed_forward_block.1} parent=39 // pred_check_branch
          %299 = sbr.rel (%p297) target = $region52
        $region51: #{feed_forward_block.1} parent=39 // pred_region
          %300 = vst [vmem:[#allocation2] sm:$0xff] 0.0
        $region52: #{feed_forward_block.1} parent=39 // pred_fallthru
          _
        %v301 = vld [vmem:[%s287] sm:$0xff]
        %v302 = vld [vmem:[#allocation3] sm:$0xff]
        %v303 = vld [vmem:[#allocation3 + $0x8] sm:$0xff]
        %v304 = vld [vmem:[#allocation3 + $0x10] sm:$0xff]
        %v305 = vld [vmem:[#allocation3 + $0x18] sm:$0xff]
        %v306 = vld [vmem:[#allocation3 + $0x20] sm:$0xff]
        %v307 = vld [vmem:[#allocation3 + $0x28] sm:$0xff]
        %v308 = vld [vmem:[#allocation3 + $0x30] sm:$0xff]
        %v309 = vld [vmem:[#allocation3 + $0x38] sm:$0xff]
        %v310 = vld [vmem:[#allocation3 + $0x40] sm:$0xff]
        %v311 = vld [vmem:[#allocation3 + $0x48] sm:$0xff]
        %v312 = vld [vmem:[#allocation3 + $0x50] sm:$0xff]
        %v313 = vld [vmem:[#allocation3 + $0x58] sm:$0xff]
        %v314 = vld [vmem:[#allocation3 + $0x60] sm:$0xff]
        %v315 = vld [vmem:[#allocation3 + $0x68] sm:$0xff]
        %v316 = vld [vmem:[#allocation3 + $0x70] sm:$0xff]
        %v317 = vld [vmem:[#allocation3 + $0x78] sm:$0xff]
        %v318 = vld [vmem:[%s290] sm:$0x1]
        %v320 = vperm.slane %v318, 0
        %322 = vmatpush.msra.mxu0 %v317
        %323 = vmatpush.msra.mxu0 %v316
        %324 = vmatpush.msra.mxu0 %v315
        %325 = vmatpush.msra.mxu0 %v314
        %326 = vmatpush.msra.mxu0 %v313
        %327 = vmatpush.msra.mxu0 %v312
        %328 = vmatpush.msra.mxu0 %v311
        %329 = vmatpush.msra.mxu0 %v310
        %330 = vmatpush.msra.mxu0 %v309
        %331 = vmatpush.msra.mxu0 %v308
        %332 = vmatpush.msra.mxu0 %v307
        %333 = vmatpush.msra.mxu0 %v306
        %334 = vmatpush.msra.mxu0 %v305
        %335 = vmatpush.msra.mxu0 %v304
        %336 = vmatpush.msra.mxu0 %v303
        %337 = vmatpush.msra.mxu0 %v302
        %338 = vmatmul.f32.gmra.mxu0 %v301
        %v339 = vpop.f32.mrf.mxu0
        %v340 = vadd.f32 %v320, %v339
        %341 = vdwg.mxu0
        %v342 = vmul.f32 %v340, 0.5
        %v343 = vmul.f32 %v340, 0.70710677
        %v344 = vmul.f32 %v343, %v343
        %v345 = vmin.f32 16.0, %v344
        %v346 = vmul.f32 %v345, 2.1237322e-06
        %v347 = vadd.f32 %v346, 0.00028619796
        %v348 = vmul.f32 %v345, %v347
        %v349 = vadd.f32 %v348, 0.0036580483
        %v350 = vmul.f32 %v345, %v349
        %v351 = vadd.f32 %v350, 0.05243302
        %v352 = vmul.f32 %v345, %v351
        %v353 = vadd.f32 %v352, 0.18741608
        %v354 = vmul.f32 %v345, %v353
        %v355 = vadd.f32 %v354, 1.1283791
        %v356 = vmul.f32 %v343, %v355
        %v357 = vmul.f32 %v345, 3.8918573e-05
        %v358 = vadd.f32 %v357, 0.001143296
        %v359 = vmul.f32 %v345, %v358
        %v360 = vadd.f32 %v359, 0.014752088
        %v361 = vmul.f32 %v345, %v360
        %v362 = vadd.f32 %v361, 0.112945676
        %v363 = vmul.f32 %v345, %v362
        %v364 = vadd.f32 %v363, 0.4994258
        %v365 = vmul.f32 %v345, %v364
        %v366 = vadd.f32 %v365, 1.0
        %v367 = vrcp.pop %v366
        %v368 = vmul.f32 %v366, %v367
        %v369 = vsub.f32 1.0, %v368
        %v370 = vmul.f32 %v367, %v369
        %v371 = vadd.f32 %v367, %v370
        %vm372 = vweird.f32 %v366
        %vm373 = vweird.f32 %v367
        %vm374 = vmor %vm372, %vm373
        %v375 = vsel %vm374, %v367, %v371
        %v376 = vand.u32 2147483647, %v366
        %vm377 = vcmp.eq.f32.partialorder %v376, 8.507059e+37
        %v378 = vand.u32 %v366, 2147483648
        %v379 = vor.u32 1.1754944e-38, %v378
        %v380 = vsel %vm377, %v379, %v375
        %v381 = vmul.f32 %v356, %v380
        %v382 = vmin.f32 %v381, 1.0
        %v383 = vmax.f32 %v382, -1.0
        %v384 = vadd.f32 %v383, 1.0
        %v385 = vmul.f32 %v342, %v384
        %v386 = vld [vmem:[#allocation2] sm:$0xff]
        %v387 = vld [vmem:[#allocation5] sm:$0xff]
        %v388 = vld [vmem:[#allocation5 + $0x8] sm:$0xff]
        %v389 = vld [vmem:[#allocation5 + $0x10] sm:$0xff]
        %v390 = vld [vmem:[#allocation5 + $0x18] sm:$0xff]
        %v391 = vld [vmem:[#allocation5 + $0x20] sm:$0xff]
        %v392 = vld [vmem:[#allocation5 + $0x28] sm:$0xff]
        %v393 = vld [vmem:[#allocation5 + $0x30] sm:$0xff]
        %v394 = vld [vmem:[#allocation5 + $0x38] sm:$0xff]
        %v395 = vld [vmem:[#allocation5 + $0x40] sm:$0xff]
        %v396 = vld [vmem:[#allocation5 + $0x48] sm:$0xff]
        %v397 = vld [vmem:[#allocation5 + $0x50] sm:$0xff]
        %v398 = vld [vmem:[#allocation5 + $0x58] sm:$0xff]
        %v399 = vld [vmem:[#allocation5 + $0x60] sm:$0xff]
        %v400 = vld [vmem:[#allocation5 + $0x68] sm:$0xff]
        %v401 = vld [vmem:[#allocation5 + $0x70] sm:$0xff]
        %v402 = vld [vmem:[#allocation5 + $0x78] sm:$0xff]
        %403 = vmatpush.msra.mxu0 %v402
        %404 = vmatpush.msra.mxu0 %v401
        %405 = vmatpush.msra.mxu0 %v400
        %406 = vmatpush.msra.mxu0 %v399
        %407 = vmatpush.msra.mxu0 %v398
        %408 = vmatpush.msra.mxu0 %v397
        %409 = vmatpush.msra.mxu0 %v396
        %410 = vmatpush.msra.mxu0 %v395
        %411 = vmatpush.msra.mxu0 %v394
        %412 = vmatpush.msra.mxu0 %v393
        %413 = vmatpush.msra.mxu0 %v392
        %414 = vmatpush.msra.mxu0 %v391
        %415 = vmatpush.msra.mxu0 %v390
        %416 = vmatpush.msra.mxu0 %v389
        %417 = vmatpush.msra.mxu0 %v388
        %418 = vmatpush.msra.mxu0 %v387
        %419 = vmatmul.f32.gmra.mxu0 %v385
        %v420 = vpop.f32.mrf.mxu0
        %v421 = vadd.f32 0.0, %v420
        %422 = vdwg.mxu0
        %v423 = vadd.f32 %v386, %v421
        %424 = vst [vmem:[#allocation2] sm:$0xff] %v423
        // Predicated region
        $region53: #{feed_forward_block.1} parent=39 // pred_check
          %p425 = pneg %p296
        $region54: #{feed_forward_block.1} parent=39 // pred_check_branch
          %427 = sbr.rel (%p425) target = $region56
        $region55: #{feed_forward_block.1} parent=39 // pred_region
          %v428 = vld [vmem:[#allocation2] sm:$0xff]
          %v429 = vld [vmem:[%s4] sm:$0x1]
          %v431 = vperm.slane %v429, 0
          %v433 = vadd.f32 %v428, %v431
          %434 = vst [vmem:[%s295] sm:$0xff] %v433
        $region56: #{feed_forward_block.1} parent=39 // pred_fallthru
          _
        %p435 = scmp.lt.s32.totalorder %s22, 1
        %s436 = scalar_select %p435, %s22, 1
        %s437 = smul.addr %s436, 8
        %s438 = scalar_lea.vmem %s5, %s437
        // Predicated region
        $region57: #{feed_forward_block.1} parent=39 // pred_check
          %p439 = pneg %p173
        $region58: #{feed_forward_block.1} parent=39 // pred_check_branch
          %441 = sbr.rel (%p439) target = $region60
        $region59: #{feed_forward_block.1} parent=39 // pred_region
          _
        $region60: #{feed_forward_block.1} parent=39 // pred_fallthru
          _
      $region40: #{feed_forward_block.1} parent=5 // pred_fallthru
        _
      %p442 = scmp.le.s32.totalorder 2, %s13
      // Predicated region
      $region61: #{feed_forward_block.1} parent=5 // pred_check
        %p443 = pneg %p442
      $region62: #{feed_forward_block.1} parent=5 // pred_check_branch
        %445 = sbr.rel (%p443) target = $region64
      $region63: #{feed_forward_block.1} parent=5 // pred_region
        %s446 = ssub.s32 %s13, 2
        // Predicated region
        $region65: #{feed_forward_block.1} parent=63 // pred_check
          %p447 = pneg %p179
        $region66: #{feed_forward_block.1} parent=63 // pred_check_branch
          %449 = sbr.rel (%p447) target = $region68
        $region67: #{feed_forward_block.1} parent=63 // pred_region
          %p450 = scmp.lt.s32.totalorder %s24, 1
          %s451 = scalar_select %p450, %s24, 1
          %s452 = smul.addr %s451, 8
          %s453 = scalar_lea.vmem %s5, %s452
        $region68: #{feed_forward_block.1} parent=63 // pred_fallthru
          _
      $region64: #{feed_forward_block.1} parent=5 // pred_fallthru
        _
    $region6: #{feed_forward_block.1} parent=1 // loop_footer
      %s17 = sadd.s32 1, %s13
    $region7: #{feed_forward_block.1} parent=1 // loop_footer_branch
      %12 = sbr.rel target = $region3
    $region8: #{feed_forward_block.1} parent=1 // loop_exit
      _
    %454 = vsyncpa [#allocation4], 1
    %s455 = scalar_lea.sflag [#allocation4], 1
    %456 = vsyncpa %s455, 1
    %457 = vsyncpa [#allocation6], 1

</llo_original>
